<compile_context>
chip_gen: v6e
topology: v6e:2x2x1
jax: 0.10.0
libtpu: 0.0.40
codegen_flags: <defaults>
</compile_context>

<pallas_src>
import functools

import jax
import jax.numpy as jnp
from jax import lax
from jax.experimental import pallas as pl
from jax.experimental.pallas import tpu as pltpu


def _round_up(x, m):
    return ((x + m - 1) // m) * m


def _vmem_capacity_bytes():
    try:
        return int(pltpu.get_tpu_info().vmem_capacity_bytes)
    except Exception:
        return 64 << 20  # conservative fallback: v7x per-TensorCore VMEM


def _ept_kernel(bias_ref, yp_ref, yr_ref, tri_ref, out_ref, *, scale, B, TB, S, D):
    """Per-batch-block partial of  sum_b sum_t (t+1)*s[b,t]*prod_{t'<t}(1-s[b,t'])."""
    # Streamed channel reduction: never materializes a [TB, D, S] f32 temporary;
    # every temporary is a [TB, S] f32 slab.  D is small and static -> unrolled.
    acc = jnp.abs(yp_ref[:, 0, :].astype(jnp.float32) -
                  yr_ref[:, 0, :].astype(jnp.float32))                    # [TB, S]
    for d in range(1, D):
        acc = acc + jnp.abs(yp_ref[:, d, :].astype(jnp.float32) -
                            yr_ref[:, d, :].astype(jnp.float32))

    # z = alpha*(err - eps) = (alpha/D) * sum_d|dy| - alpha*eps
    z = acc * scale - bias_ref[0]                                         # [TB, S]

    needs_mask = (B % TB) != 0                                            # static python bool
    if needs_mask:
        b0 = pl.program_id(0) * TB
        row = lax.broadcasted_iota(jnp.int32, (TB, 1), 0)
        valid = (b0 + row) < B                                            # [TB, 1]
        # Lane select (NOT a multiply): garbage/NaN from padded rows cannot propagate.
        z = jnp.where(valid, z, 0.0)

    # log(1 - sigmoid(z)) = -softplus(z); log1p keeps precision; divide-free.
    logp = -(jnp.maximum(z, 0.0) + jnp.log1p(jnp.exp(-jnp.abs(z))))       # [TB, S]

    # Exclusive prefix-sum of logp via the constant 0/1 "t' < t" mask matmul:
    # ecum[b,t] = sum_{t'<t} logp[b,t'];  alive[b,t] = exp(ecum[b,t]).
    ecum = jnp.dot(logp, tri_ref[...], preferred_element_type=jnp.float32)  # [TB, S]

    # Telescoping identity: sum_t (t+1)*s_t*alive_t = sum_t alive_t - S*prod_t(1-s_t)
    alive_sum = jnp.sum(jnp.exp(ecum), axis=-1, keepdims=True)            # [TB, 1]
    survive_all = jnp.exp(jnp.sum(logp, axis=-1, keepdims=True))          # [TB, 1]
    t_soft = alive_sum - float(S) * survive_all                           # [TB, 1]
    if needs_mask:
        t_soft = jnp.where(valid, t_soft, 0.0)

    out_ref[0] = jnp.sum(t_soft, axis=0, keepdims=True)                   # [1, 1] partial


def ept_hinge_loss_smooth(y_pred, y_real, global_std, alpha=2.0):
    """Pallas-backed forward of EPTHingeLossSmooth.  Returns a scalar loss."""
    B, D, S = y_pred.shape
    itemsize = jnp.dtype(y_pred.dtype).itemsize

    # ---- tile sizing: arch-aware VMEM budget, padding-aware accounting -------
    vmem_cap = _vmem_capacity_bytes()
    big_vmem = vmem_cap >= (96 << 20)                     # v5e/v6e (128 MiB) vs v7x (64 MiB)
    input_budget = (48 << 20) if big_vmem else (14 << 20)

    sub = max(8, 8 * (4 // max(itemsize, 1)))             # sublane tile: 8 f32 / 16 bf16 / 32 int8
    d_pad = _round_up(D, sub)                             # (D,S) slabs sublane-pad when D < sub
    s_pad = _round_up(S, 128)
    slab_in = d_pad * s_pad * itemsize                    # padded VMEM bytes / batch row / input
    stream_per_row = 2 * 2 * slab_in                      # 2 inputs x 2 pipeline buffers
    compute_per_row = 10 * s_pad * 4                      # in-kernel f32 [*, S] temporaries
    TB = max(1, int(input_budget // (stream_per_row + compute_per_row)))
    if B >= 2:                                            # keep both v7x TCs busy: >= 2 grid steps
        TB = min(TB, -(-B // 2))
    TB = min(TB, B)
    if TB >= 8:
        TB = (TB // 8) * 8                                # sublane / MXU-M alignment
    G = -(-B // TB)

    # ---- fold scalars outside the hot loop ------------------------------------
    eps = jnp.mean(global_std.astype(jnp.float32))
    bias = (alpha * eps).astype(jnp.float32).reshape(1)   # alpha*eps  -> SMEM scalar
    scale = float(alpha) / float(D)                       # alpha/D    -> compile-time const

    # Constant 0/1 mask M[t',t] = 1 iff t' < t (exclusive prefix), built once,
    # fetched once (constant block index across the grid).
    tri = (jnp.arange(S)[:, None] < jnp.arange(S)[None, :]).astype(jnp.float32)

    tri_bytes = 2 * s_pad * s_pad * 4                     # double-buffered constant block
    vmem_need = TB * (stream_per_row + compute_per_row) + tri_bytes + (2 << 20)
    vmem_limit = int(min(max(vmem_need, 32 << 20), vmem_cap))

    partials = pl.pallas_call(
        functools.partial(_ept_kernel, scale=scale, B=B, TB=TB, S=S, D=D),
        out_shape=jax.ShapeDtypeStruct((G, 1, 1), jnp.float32),
        grid=(G,),
        in_specs=[
            pl.BlockSpec(memory_space=pltpu.MemorySpace.SMEM),   # alpha*eps scalar
            pl.BlockSpec((TB, D, S), lambda b: (b, 0, 0)),       # y_pred batch tile
            pl.BlockSpec((TB, D, S), lambda b: (b, 0, 0)),       # y_real batch tile
            pl.BlockSpec((S, S), lambda b: (0, 0)),              # tri mask (constant block)
        ],
        out_specs=pl.BlockSpec((1, 1, 1), lambda b: (b, 0, 0)),  # per-block partial sums
        compiler_params=pltpu.CompilerParams(
            dimension_semantics=("parallel",),                   # no carried state across B
            vmem_limit_bytes=vmem_limit,
        ),
    )(bias, y_pred, y_real, tri)

    # Trivial epilogue: -mean over the batch (folds -1/B exactly once).
    return -(jnp.sum(partials) / B)


def _reference(y_pred, y_real, global_std, alpha=2.0):
    """Pure-JAX mirror of the PyTorch forward, for correctness checking."""
    err = jnp.mean(jnp.abs(y_pred.astype(jnp.float32) - y_real.astype(jnp.float32)), axis=1)
    eps = jnp.mean(global_std.astype(jnp.float32))
    s = jax.nn.sigmoid(alpha * (err - eps))
    no_breach = jnp.cumprod(1.0 - s, axis=1)
    alive = jnp.concatenate([jnp.ones_like(no_breach[:, :1]), no_breach[:, :-1]], axis=1)
    fbp = s * alive
    idxs = jnp.arange(1, err.shape[1] + 1, dtype=err.dtype)
    return -jnp.mean(jnp.sum(fbp * idxs, axis=1))


if __name__ == "__main__":
    B, D, S = 2, 4, 8
    key = jax.random.PRNGKey(0)
    k1, k2, k3 = jax.random.split(key, 3)
    y_pred = jax.random.normal(k1, (B, D, S), dtype=jnp.float32)
    y_real = jax.random.normal(k2, (B, D, S), dtype=jnp.float32)
    # deterministic per-channel thresholds (1-D, length D), strictly positive
    global_std = jax.random.uniform(k3, (D,), dtype=jnp.float32, minval=0.1, maxval=1.0)

    loss = jax.jit(ept_hinge_loss_smooth)(y_pred, y_real, global_std)
    loss = jax.block_until_ready(loss)

    ref = _reference(y_pred, y_real, global_std)
    assert jnp.allclose(loss, ref, atol=2e-4, rtol=2e-4), (loss, ref)

    print("KERNEL_OK")
</pallas_src>

<mosaic_0001>
module attributes {stable_mosaic.version = 11 : i64} {
  func.func @_ept_kernel(%arg0: i32, %arg1: memref<1xf32, #tpu.memory_space<smem>>, %arg2: memref<1x4x8xf32, #tpu.memory_space<vmem>>, %arg3: memref<1x4x8xf32, #tpu.memory_space<vmem>>, %arg4: memref<8x8xf32, #tpu.memory_space<vmem>>, %arg5: memref<1x1x1xf32, #tpu.memory_space<vmem>>) attributes {dimension_semantics = [#tpu.dimension_semantics<parallel>], iteration_bounds = array<i64: 2>, scalar_prefetch = 0 : i64, scratch_operands = 0 : i64, tpu.core_type = #tpu.core_type<tc>, window_params = [{transform_indices = @transform_0, window_bounds = array<i64: 1>}, {transform_indices = @transform_1, window_bounds = array<i64: 1, 4, 8>}, {transform_indices = @transform_2, window_bounds = array<i64: 1, 4, 8>}, {pipeline_mode = #tpu.pipeline_mode<synchronous>, transform_indices = @transform_3, window_bounds = array<i64: 8, 8>}, {transform_indices = @transform_4, window_bounds = array<i64: 1, 1, 1>}]} {
    %c0 = arith.constant 0 : index
    %c0_0 = arith.constant 0 : index
    %c0_1 = arith.constant 0 : index
    %0 = vector.load %arg2[%c0, %c0_0, %c0_1] : memref<1x4x8xf32, #tpu.memory_space<vmem>>, vector<1x1x8xf32>
    %1 = vector.shape_cast %0 : vector<1x1x8xf32> to vector<1x8xf32>
    %c0_2 = arith.constant 0 : index
    %c0_3 = arith.constant 0 : index
    %c0_4 = arith.constant 0 : index
    %2 = vector.load %arg3[%c0_2, %c0_3, %c0_4] : memref<1x4x8xf32, #tpu.memory_space<vmem>>, vector<1x1x8xf32>
    %3 = vector.shape_cast %2 : vector<1x1x8xf32> to vector<1x8xf32>
    %4 = arith.subf %1, %3 : vector<1x8xf32>
    %5 = math.absf %4 : vector<1x8xf32>
    %c0_5 = arith.constant 0 : index
    %c1 = arith.constant 1 : index
    %c0_6 = arith.constant 0 : index
    %6 = vector.load %arg2[%c0_5, %c1, %c0_6] : memref<1x4x8xf32, #tpu.memory_space<vmem>>, vector<1x1x8xf32>
    %7 = vector.shape_cast %6 : vector<1x1x8xf32> to vector<1x8xf32>
    %c0_7 = arith.constant 0 : index
    %c1_8 = arith.constant 1 : index
    %c0_9 = arith.constant 0 : index
    %8 = vector.load %arg3[%c0_7, %c1_8, %c0_9] : memref<1x4x8xf32, #tpu.memory_space<vmem>>, vector<1x1x8xf32>
    %9 = vector.shape_cast %8 : vector<1x1x8xf32> to vector<1x8xf32>
    %10 = arith.subf %7, %9 : vector<1x8xf32>
    %11 = math.absf %10 : vector<1x8xf32>
    %12 = arith.addf %5, %11 : vector<1x8xf32>
    %c0_10 = arith.constant 0 : index
    %c2 = arith.constant 2 : index
    %c0_11 = arith.constant 0 : index
    %13 = vector.load %arg2[%c0_10, %c2, %c0_11] : memref<1x4x8xf32, #tpu.memory_space<vmem>>, vector<1x1x8xf32>
    %14 = vector.shape_cast %13 : vector<1x1x8xf32> to vector<1x8xf32>
    %c0_12 = arith.constant 0 : index
    %c2_13 = arith.constant 2 : index
    %c0_14 = arith.constant 0 : index
    %15 = vector.load %arg3[%c0_12, %c2_13, %c0_14] : memref<1x4x8xf32, #tpu.memory_space<vmem>>, vector<1x1x8xf32>
    %16 = vector.shape_cast %15 : vector<1x1x8xf32> to vector<1x8xf32>
    %17 = arith.subf %14, %16 : vector<1x8xf32>
    %18 = math.absf %17 : vector<1x8xf32>
    %19 = arith.addf %12, %18 : vector<1x8xf32>
    %c0_15 = arith.constant 0 : index
    %c3 = arith.constant 3 : index
    %c0_16 = arith.constant 0 : index
    %20 = vector.load %arg2[%c0_15, %c3, %c0_16] : memref<1x4x8xf32, #tpu.memory_space<vmem>>, vector<1x1x8xf32>
    %21 = vector.shape_cast %20 : vector<1x1x8xf32> to vector<1x8xf32>
    %c0_17 = arith.constant 0 : index
    %c3_18 = arith.constant 3 : index
    %c0_19 = arith.constant 0 : index
    %22 = vector.load %arg3[%c0_17, %c3_18, %c0_19] : memref<1x4x8xf32, #tpu.memory_space<vmem>>, vector<1x1x8xf32>
    %23 = vector.shape_cast %22 : vector<1x1x8xf32> to vector<1x8xf32>
    %24 = arith.subf %21, %23 : vector<1x8xf32>
    %25 = math.absf %24 : vector<1x8xf32>
    %26 = arith.addf %19, %25 : vector<1x8xf32>
    %cst = arith.constant 5.000000e-01 : f32
    %27 = vector.broadcast %cst : f32 to vector<1x8xf32>
    %28 = arith.mulf %26, %27 : vector<1x8xf32>
    %c0_20 = arith.constant 0 : index
    %29 = memref.load %arg1[%c0_20] : memref<1xf32, #tpu.memory_space<smem>>
    %30 = vector.broadcast %29 : f32 to vector<1x8xf32>
    %31 = arith.subf %28, %30 : vector<1x8xf32>
    %cst_21 = arith.constant 0.000000e+00 : f32
    %32 = vector.broadcast %cst_21 : f32 to vector<1x8xf32>
    %33 = arith.maximumf %31, %32 : vector<1x8xf32>
    %34 = math.absf %31 : vector<1x8xf32>
    %cst_22 = arith.constant 0.000000e+00 : f32
    %35 = vector.broadcast %cst_22 : f32 to vector<1x8xf32>
    %36 = arith.subf %35, %34 : vector<1x8xf32>
    %37 = math.exp %36 : vector<1x8xf32>
    %38 = math.log1p %37 : vector<1x8xf32>
    %39 = arith.addf %33, %38 : vector<1x8xf32>
    %cst_23 = arith.constant 0.000000e+00 : f32
    %40 = vector.broadcast %cst_23 : f32 to vector<1x8xf32>
    %41 = arith.subf %40, %39 : vector<1x8xf32>
    %c0_24 = arith.constant 0 : index
    %c0_25 = arith.constant 0 : index
    %42 = vector.load %arg4[%c0_24, %c0_25] : memref<8x8xf32, #tpu.memory_space<vmem>>, vector<8x8xf32>
    %cst_26 = arith.constant dense<0.000000e+00> : vector<1x8xf32>
    %43 = tpu.matmul %41, %42, %cst_26 {dimension_numbers = #tpu.dot_dimension_numbers<[1], [0], [0], [1], [0, 0, 1, 1], [], []>} : vector<1x8xf32>, vector<8x8xf32>, vector<1x8xf32> -> vector<1x8xf32>
    %44 = math.exp %43 : vector<1x8xf32>
    %cst_27 = arith.constant dense<0.000000e+00> : vector<1xf32>
    %45 = vector.multi_reduction <add>, %44, %cst_27 [1] : vector<1x8xf32> to vector<1xf32>
    %46 = vector.shape_cast %45 : vector<1xf32> to vector<1x1xf32>
    %cst_28 = arith.constant dense<0.000000e+00> : vector<1xf32>
    %47 = vector.multi_reduction <add>, %41, %cst_28 [1] : vector<1x8xf32> to vector<1xf32>
    %48 = vector.shape_cast %47 : vector<1xf32> to vector<1x1xf32>
    %49 = math.exp %48 : vector<1x1xf32>
    %cst_29 = arith.constant 8.000000e+00 : f32
    %50 = vector.broadcast %cst_29 : f32 to vector<1x1xf32>
    %51 = arith.mulf %50, %49 : vector<1x1xf32>
    %52 = arith.subf %46, %51 : vector<1x1xf32>
    %cst_30 = arith.constant dense<0.000000e+00> : vector<1xf32>
    %53 = vector.multi_reduction <add>, %52, %cst_30 [0] : vector<1x1xf32> to vector<1xf32>
    %54 = vector.shape_cast %53 : vector<1xf32> to vector<1x1xf32>
    %c0_31 = arith.constant 0 : index
    %c0_32 = arith.constant 0 : index
    %c0_33 = arith.constant 0 : index
    %55 = vector.load %arg5[%c0_31, %c0_32, %c0_33] : memref<1x1x1xf32, #tpu.memory_space<vmem>>, vector<1x1x1xf32>
    %56 = vector.shape_cast %55 : vector<1x1x1xf32> to vector<1x1xf32>
    %57 = vector.shape_cast %54 : vector<1x1xf32> to vector<1x1x1xf32>
    tpu.vector_store %arg5[%c0_31, %c0_32, %c0_33], %57 {strides = array<i32>} : memref<1x1x1xf32, #tpu.memory_space<vmem>>, vector<1x1x1xf32>,
    return
  }
  func.func @transform_0(%arg0: i32) -> i32 {
    %c0_i32 = arith.constant 0 : i32
    %c0_i32_0 = arith.constant 0 : i32
    return %c0_i32 : i32
  }
  func.func @transform_1(%arg0: i32) -> (i32, i32, i32) {
    %c0_i32 = arith.constant 0 : i32
    %c0_i32_0 = arith.constant 0 : i32
    %c0_i32_1 = arith.constant 0 : i32
    return %arg0, %c0_i32, %c0_i32_0 : i32, i32, i32
  }
  func.func @transform_2(%arg0: i32) -> (i32, i32, i32) {
    %c0_i32 = arith.constant 0 : i32
    %c0_i32_0 = arith.constant 0 : i32
    %c0_i32_1 = arith.constant 0 : i32
    return %arg0, %c0_i32, %c0_i32_0 : i32, i32, i32
  }
  func.func @transform_3(%arg0: i32) -> (i32, i32) {
    %c0_i32 = arith.constant 0 : i32
    %c0_i32_0 = arith.constant 0 : i32
    %c0_i32_1 = arith.constant 0 : i32
    return %c0_i32, %c0_i32_0 : i32, i32
  }
  func.func @transform_4(%arg0: i32) -> (i32, i32, i32) {
    %c0_i32 = arith.constant 0 : i32
    %c0_i32_0 = arith.constant 0 : i32
    %c0_i32_1 = arith.constant 0 : i32
    return %arg0, %c0_i32, %c0_i32_0 : i32, i32, i32
  }
}

</mosaic_0001>

<llo_original>
// kernel: ept_hinge_loss_smooth.1
$region0: #{ept_hinge_loss_smooth.1}
  #allocation0 [shape = 'u32[]', space=smem, size = 0x4, offset = 0x4, fixed_abs, tag = 'smem constant byte address 0x4 - core index']
  #allocation1 [shape = 'u32[144,128]{1,0:T(1,128)}', space=vmem, size = 0x12000, scoped, tag = 'internal scratch']
  #allocation2 [shape = 'f32[1]{0:T(128)S(6)}', space=smem, size = 0x200, scoped, tag = 'scoped memory for ept_hinge_loss_smooth.1']
  %s0 = inlined_call_operand.<no memory space> [shape: f32[1], index: 0, kind: input, shape index: {}]
  %s1 = inlined_call_operand.vmem [shape: f32[2,4,8], index: 1, kind: input, shape index: {}]
  %s2 = inlined_call_operand.vmem [shape: f32[2,4,8], index: 2, kind: input, shape index: {}]
  %s3 = inlined_call_operand.vmem [shape: f32[8,8], index: 3, kind: input, shape index: {}]
  %s4 = inlined_call_operand.vmem [shape: f32[2,1,1], index: 4, kind: output, shape index: {}]
  %s5 = sld [smem:[#allocation0]]
  $region49: #{ept_hinge_loss_smooth.1} parent=0
    _
  %s7 = ssub.s32 1, %s5
  %s8 = scalar_select 0, %s7, %s5
  %9 = sst [smem:[#allocation2]] %s0
  loop: start=0, step=1, limit=4
  $region2: #{ept_hinge_loss_smooth.1} parent=0 // loop_pre_header
    _
  $region3: #{ept_hinge_loss_smooth.1} parent=0 // loop_header
    %s11 = sphi 0, %s15
    %p12 = scmp.ge.s32.totalorder %s11, 4
    %s19 = sphi 0, %s19
    %s21 = sphi 0, %s19
    %s22 = sphi 0, %s21
    %s36 = sphi 0, %s22
    %s42 = sphi 0, %s44
    %s45 = sphi 0, %s42
    %s46 = sphi 0, %s45
    %s62 = sphi 0, %s46
    %s68 = sphi 0, %s70
    %s71 = sphi 0, %s68
    %s72 = sphi 0, %s71
    %s88 = sphi 0, %s72
    %s92 = sphi 0, %s92
    %s94 = sphi 0, %s92
    %s95 = sphi 0, %s94
    %s109 = sphi 0, %s95
    %s115 = sphi 0, %s117
    %s118 = sphi 0, %s115
    %s119 = sphi 0, %s118
    %s135 = sphi 0, %s119
  $region4: #{ept_hinge_loss_smooth.1} parent=0 // loop_header_branch
    %14 = sbr.rel (%p12) target = $region8
  $region5: #{ept_hinge_loss_smooth.1} parent=0 // loop_body
    %s16 = ssub.s32 %s11, 1
    %s17 = ssub.s32 %s11, 2
    %s18 = sadd.s32 %s11, 1
    %s20 = sadd.s32 %s19, 1
    %p23 = scmp.eq.s32.totalorder %s11, 1
    %p24 = scmp.ne.s32.totalorder %s19, %s21
    %p25 = scmp.eq.s32.totalorder %s11, 0
    %p26 = por %p24, %p25
    %p27 = scmp.ne.s32.totalorder %s19, %s21
    %p28 = scmp.eq.s32.totalorder %s16, 1
    %p29 = por %p27, %p28
    %p30 = scmp.ne.s32.totalorder %s21, %s22
    %p31 = scmp.eq.s32.totalorder %s16, 0
    %p32 = por %p30, %p31
    %p33 = scmp.ne.s32.totalorder %s21, %s22
    %p34 = scmp.eq.s32.totalorder %s17, 1
    %p35 = por %p33, %p34
    %p37 = scmp.ne.s32.totalorder %s22, %s36
    %p38 = scmp.eq.s32.totalorder %s17, 0
    %p39 = por %p37, %p38
    %s40 = ssub.s32 %s11, %s18
    %p41 = scmp.eq.s32.totalorder %s40, 0
    %s43 = sadd.s32 %s42, 1
    %s44 = scalar_select %p41, %s42, %s43
    %p47 = pneg %p41
    %p48 = scmp.eq.s32.totalorder %s11, 1
    %p49 = por %p47, %p48
    %p50 = scmp.ne.s32.totalorder %s42, %s45
    %p51 = scmp.eq.s32.totalorder %s11, 0
    %p52 = por %p50, %p51
    %p53 = scmp.ne.s32.totalorder %s42, %s45
    %p54 = scmp.eq.s32.totalorder %s16, 1
    %p55 = por %p53, %p54
    %p56 = scmp.ne.s32.totalorder %s45, %s46
    %p57 = scmp.eq.s32.totalorder %s16, 0
    %p58 = por %p56, %p57
    %p59 = scmp.ne.s32.totalorder %s45, %s46
    %p60 = scmp.eq.s32.totalorder %s17, 1
    %p61 = por %p59, %p60
    %p63 = scmp.ne.s32.totalorder %s46, %s62
    %p64 = scmp.eq.s32.totalorder %s17, 0
    %p65 = por %p63, %p64
    %s66 = ssub.s32 %s11, %s18
    %p67 = scmp.eq.s32.totalorder %s66, 0
    %s69 = sadd.s32 %s68, 1
    %s70 = scalar_select %p67, %s68, %s69
    %p73 = pneg %p67
    %p74 = scmp.eq.s32.totalorder %s11, 1
    %p75 = por %p73, %p74
    %p76 = scmp.ne.s32.totalorder %s68, %s71
    %p77 = scmp.eq.s32.totalorder %s11, 0
    %p78 = por %p76, %p77
    %p79 = scmp.ne.s32.totalorder %s68, %s71
    %p80 = scmp.eq.s32.totalorder %s16, 1
    %p81 = por %p79, %p80
    %p82 = scmp.ne.s32.totalorder %s71, %s72
    %p83 = scmp.eq.s32.totalorder %s16, 0
    %p84 = por %p82, %p83
    %p85 = scmp.ne.s32.totalorder %s71, %s72
    %p86 = scmp.eq.s32.totalorder %s17, 1
    %p87 = por %p85, %p86
    %p89 = scmp.ne.s32.totalorder %s72, %s88
    %p90 = scmp.eq.s32.totalorder %s17, 0
    %p91 = por %p89, %p90
    %s93 = sadd.s32 %s92, 1
    %p96 = scmp.eq.s32.totalorder %s11, 1
    %p97 = scmp.ne.s32.totalorder %s92, %s94
    %p98 = scmp.eq.s32.totalorder %s11, 0
    %p99 = por %p97, %p98
    %p100 = scmp.ne.s32.totalorder %s92, %s94
    %p101 = scmp.eq.s32.totalorder %s16, 1
    %p102 = por %p100, %p101
    %p103 = scmp.ne.s32.totalorder %s94, %s95
    %p104 = scmp.eq.s32.totalorder %s16, 0
    %p105 = por %p103, %p104
    %p106 = scmp.ne.s32.totalorder %s94, %s95
    %p107 = scmp.eq.s32.totalorder %s17, 1
    %p108 = por %p106, %p107
    %p110 = scmp.ne.s32.totalorder %s95, %s109
    %p111 = scmp.eq.s32.totalorder %s17, 0
    %p112 = por %p110, %p111
    %s113 = ssub.s32 %s11, %s18
    %p114 = scmp.eq.s32.totalorder %s113, 0
    %s116 = sadd.s32 %s115, 1
    %s117 = scalar_select %p114, %s115, %s116
    %p120 = pneg %p114
    %p121 = scmp.eq.s32.totalorder %s11, 1
    %p122 = por %p120, %p121
    %p123 = scmp.ne.s32.totalorder %s115, %s118
    %p124 = scmp.eq.s32.totalorder %s11, 0
    %p125 = por %p123, %p124
    %p126 = scmp.ne.s32.totalorder %s115, %s118
    %p127 = scmp.eq.s32.totalorder %s16, 1
    %p128 = por %p126, %p127
    %p129 = scmp.ne.s32.totalorder %s118, %s119
    %p130 = scmp.eq.s32.totalorder %s16, 0
    %p131 = por %p129, %p130
    %p132 = scmp.ne.s32.totalorder %s118, %s119
    %p133 = scmp.eq.s32.totalorder %s17, 1
    %p134 = por %p132, %p133
    %p136 = scmp.ne.s32.totalorder %s119, %s135
    %p137 = scmp.eq.s32.totalorder %s17, 0
    %p138 = por %p136, %p137
    %p139 = scmp.le.s32.totalorder 1, %s11
    %p140 = scmp.lt.s32.totalorder %s11, 3
    %p141 = pnand %p139, %p140
    %p142 = pneg %p141
    // Predicated region
    $region9: #{ept_hinge_loss_smooth.1} parent=5 // pred_check
      _
    $region10: #{ept_hinge_loss_smooth.1} parent=5 // pred_check_branch
      %144 = sbr.rel (%p141) target = $region12
    $region11: #{ept_hinge_loss_smooth.1} parent=5 // pred_region
      %s145 = ssub.s32 %s11, 1
      // Predicated region
      $region13: #{ept_hinge_loss_smooth.1} parent=11 // pred_check
        %p146 = pneg %p32
      $region14: #{ept_hinge_loss_smooth.1} parent=11 // pred_check_branch
        %148 = sbr.rel (%p146) target = $region16
      $region15: #{ept_hinge_loss_smooth.1} parent=11 // pred_region
        _
      $region16: #{ept_hinge_loss_smooth.1} parent=11 // pred_fallthru
        _
      // Predicated region
      $region17: #{ept_hinge_loss_smooth.1} parent=11 // pred_check
        %p149 = pneg %p105
      $region18: #{ept_hinge_loss_smooth.1} parent=11 // pred_check_branch
        %151 = sbr.rel (%p149) target = $region20
      $region19: #{ept_hinge_loss_smooth.1} parent=11 // pred_region
        _
      $region20: #{ept_hinge_loss_smooth.1} parent=11 // pred_fallthru
        _
    $region12: #{ept_hinge_loss_smooth.1} parent=5 // pred_fallthru
      _
    %p152 = scmp.lt.s32.totalorder %s11, 2
    // Predicated region
    $region21: #{ept_hinge_loss_smooth.1} parent=5 // pred_check
      %p153 = pneg %p152
    $region22: #{ept_hinge_loss_smooth.1} parent=5 // pred_check_branch
      %155 = sbr.rel (%p153) target = $region24
    $region23: #{ept_hinge_loss_smooth.1} parent=5 // pred_region
      // Predicated region
      $region25: #{ept_hinge_loss_smooth.1} parent=23 // pred_check
        %p156 = pneg %p52
      $region26: #{ept_hinge_loss_smooth.1} parent=23 // pred_check_branch
        %158 = sbr.rel (%p156) target = $region28
      $region27: #{ept_hinge_loss_smooth.1} parent=23 // pred_region
        %p159 = scmp.lt.s32.totalorder %s11, 1
        %s160 = scalar_select %p159, %s11, 1
        %s161 = smul.addr %s160, 4
        %s162 = scalar_lea.vmem %s1, %s161
      $region28: #{ept_hinge_loss_smooth.1} parent=23 // pred_fallthru
        _
      // Predicated region
      $region29: #{ept_hinge_loss_smooth.1} parent=23 // pred_check
        %p163 = pneg %p78
      $region30: #{ept_hinge_loss_smooth.1} parent=23 // pred_check_branch
        %165 = sbr.rel (%p163) target = $region32
      $region31: #{ept_hinge_loss_smooth.1} parent=23 // pred_region
        %p166 = scmp.lt.s32.totalorder %s11, 1
        %s167 = scalar_select %p166, %s11, 1
        %s168 = smul.addr %s167, 4
        %s169 = scalar_lea.vmem %s2, %s168
      $region32: #{ept_hinge_loss_smooth.1} parent=23 // pred_fallthru
        _
    $region24: #{ept_hinge_loss_smooth.1} parent=5 // pred_fallthru
      _
    %p170 = scmp.le.s32.totalorder 1, %s11
    %p171 = scmp.lt.s32.totalorder %s11, 3
    %p172 = pnand %p170, %p171
    %p173 = pneg %p172
    // Predicated region
    $region33: #{ept_hinge_loss_smooth.1} parent=5 // pred_check
      _
    $region34: #{ept_hinge_loss_smooth.1} parent=5 // pred_check_branch
      %175 = sbr.rel (%p172) target = $region36
    $region35: #{ept_hinge_loss_smooth.1} parent=5 // pred_region
      %s176 = ssub.s32 %s11, 1
      %p177 = pneg %p32
      %p178 = pneg %p29
      %p179 = scmp.lt.s32.totalorder %s16, 1
      %s180 = scalar_select %p179, %s16, 1
      %s181 = smul.addr %s180, 4
      %s182 = scalar_lea.vmem %s1, %s181
      %p183 = pneg %p58
      %p184 = pneg %p55
      %p185 = scmp.lt.s32.totalorder %s16, 1
      %s186 = scalar_select %p185, %s16, 1
      %s187 = smul.addr %s186, 4
      %s188 = scalar_lea.vmem %s2, %s187
      %p189 = pneg %p84
      %p190 = pneg %p81
      %p191 = pneg %p105
      %p192 = pneg %p102
      %p193 = pneg %p131
      %p194 = pneg %p128
      %p195 = scmp.lt.s32.totalorder %s16, 1
      %s196 = scalar_select %p195, %s16, 1
      %s197 = scalar_lea.vmem %s4, %s196
      %p198 = scmp.lt.s32.totalorder %s16, 1
      %s199 = scalar_select %p198, %s16, 1
      %s200 = smul.addr %s199, 4
      %s201 = scalar_lea.vmem %s1, %s200
      %p202 = scmp.lt.s32.totalorder %s16, 1
      %s203 = scalar_select %p202, %s16, 1
      %s204 = smul.addr %s203, 4
      %s205 = scalar_lea.vmem %s2, %s204
      %p206 = scmp.lt.s32.totalorder %s16, 1
      %s207 = scalar_select %p206, %s16, 1
      %s208 = scalar_lea.vmem %s4, %s207
      %v209 = vld [vmem:[%s201] sm:$0x1]
      %v210 = vld [vmem:[%s205] sm:$0x1]
      %v211 = vsub.f32 %v209, %v210
      %v212 = vand.u32 2147483647, %v211
      %v213 = vld [vmem:[%s201 + $0x1] sm:$0x1]
      %v214 = vld [vmem:[%s205 + $0x1] sm:$0x1]
      %v215 = vsub.f32 %v213, %v214
      %v216 = vand.u32 2147483647, %v215
      %v217 = vadd.f32 %v212, %v216
      %v218 = vld [vmem:[%s201 + $0x2] sm:$0x1]
      %v219 = vld [vmem:[%s205 + $0x2] sm:$0x1]
      %v220 = vsub.f32 %v218, %v219
      %v221 = vand.u32 2147483647, %v220
      %v222 = vadd.f32 %v217, %v221
      %v223 = vld [vmem:[%s201 + $0x3] sm:$0x1]
      %v224 = vld [vmem:[%s205 + $0x3] sm:$0x1]
      %v225 = vsub.f32 %v223, %v224
      %v226 = vand.u32 2147483647, %v225
      %v227 = vadd.f32 %v222, %v226
      %v228 = vmul.f32 %v227, 0.5
      %s229 = sld [smem:[#allocation2]]
      %v230 = vstv %s229
      %v231 = vsub.f32 %v228, %v230
      %v232 = vmax.f32 %v231, 0.0
      %v233 = vand.u32 2147483647, %v231
      %v234 = vsub.f32 0.0, %v233
      %v235 = vmul.f32 %v234, 1.442695
      %v236 = vpow.pop %v235
      %v237 = vadd.f32 %v236, 1.0
      %v238 = vlog2.pop %v237
      %v239 = vmul.f32 %v238, 0.6931472
      %v240 = vmul.f32 -0.5, %v236
      %v241 = vadd.f32 %v240, 1.0
      %v242 = vmul.f32 %v241, %v236
      %v243 = vand.u32 2147483647, %v236
      %vm244 = vcmp.lt.f32.partialorder %v243, 0.0004427343
      %v245 = vsel %vm244, %v242, %v239
      %v246 = vadd.f32 %v232, %v245
      %v247 = vsub.f32 0.0, %v246
      %v248 = vld [vmem:[%s3] sm:$0xff]
      %vm249 = vcmask 64512
      %v251 = vsel %vm249, %v247, 0
      %253 = vmatprep.subr.mxu0 0.0
      %254 = vmatpush1.msra.mxu0 0.0
      %255 = vmatprep.subr.mxu0 0.0
      %256 = vmatpush1.msra.mxu0 0.0
      %257 = vmatprep.subr.mxu0 0.0
      %258 = vmatpush1.msra.mxu0 0.0
      %259 = vmatprep.subr.mxu0 0.0
      %260 = vmatpush1.msra.mxu0 0.0
      %261 = vmatprep.subr.mxu0 0.0
      %262 = vmatpush1.msra.mxu0 0.0
      %263 = vmatprep.subr.mxu0 0.0
      %264 = vmatpush1.msra.mxu0 0.0
      %265 = vmatprep.subr.mxu0 0.0
      %266 = vmatpush1.msra.mxu0 0.0
      %267 = vmatprep.subr.mxu0 0.0
      %268 = vmatpush1.msra.mxu0 0.0
      %269 = vmatprep.subr.mxu0 0.0
      %270 = vmatpush1.msra.mxu0 0.0
      %271 = vmatprep.subr.mxu0 0.0
      %272 = vmatpush1.msra.mxu0 0.0
      %273 = vmatprep.subr.mxu0 0.0
      %274 = vmatpush1.msra.mxu0 0.0
      %275 = vmatprep.subr.mxu0 0.0
      %276 = vmatpush1.msra.mxu0 0.0
      %277 = vmatprep.subr.mxu0 0.0
      %278 = vmatpush1.msra.mxu0 0.0
      %279 = vmatprep.subr.mxu0 0.0
      %280 = vmatpush1.msra.mxu0 0.0
      %281 = vmatprep.subr.mxu0 0.0
      %282 = vmatpush1.msra.mxu0 0.0
      %283 = vmatprep.subr.mxu0 0.0
      %284 = vmatpush1.msra.mxu0 %v248
      %285 = vmatprep.subr.mxu0 0.0
      %286 = vmatpush2.msra.mxu0 0.0
      %287 = vmatprep.subr.mxu0 0.0
      %288 = vmatpush2.msra.mxu0 0.0
      %289 = vmatprep.subr.mxu0 0.0
      %290 = vmatpush2.msra.mxu0 0.0
      %291 = vmatprep.subr.mxu0 0.0
      %292 = vmatpush2.msra.mxu0 0.0
      %293 = vmatprep.subr.mxu0 0.0
      %294 = vmatpush2.msra.mxu0 0.0
      %295 = vmatprep.subr.mxu0 0.0
      %296 = vmatpush2.msra.mxu0 0.0
      %297 = vmatprep.subr.mxu0 0.0
      %298 = vmatpush2.msra.mxu0 0.0
      %299 = vmatprep.subr.mxu0 0.0
      %300 = vmatpush2.msra.mxu0 0.0
      %301 = vmatprep.subr.mxu0 0.0
      %302 = vmatpush2.msra.mxu0 0.0
      %303 = vmatprep.subr.mxu0 0.0
      %304 = vmatpush2.msra.mxu0 0.0
      %305 = vmatprep.subr.mxu0 0.0
      %306 = vmatpush2.msra.mxu0 0.0
      %307 = vmatprep.subr.mxu0 0.0
      %308 = vmatpush2.msra.mxu0 0.0
      %309 = vmatprep.subr.mxu0 0.0
      %310 = vmatpush2.msra.mxu0 0.0
      %311 = vmatprep.subr.mxu0 0.0
      %312 = vmatpush2.msra.mxu0 0.0
      %313 = vmatprep.subr.mxu0 0.0
      %314 = vmatpush2.msra.mxu0 0.0
      %315 = vmatprep.subr.mxu0 0.0
      %316 = vmatpush2.msra.mxu0 0.0
      %317 = vmatprep.mubr.f32.mxu0 0.0
      %318 = vmatmul.mubr.f32.gmra.mxu0 %v251
      %v319 = vpop.f32.mrf.mxu0
      %v320 = vadd.f32 0.0, %v319
      %v321 = vpop.f32.mrf.mxu0
      %322 = vdwg.mxu0
      %v323 = vmul.f32 %v320, 1.442695
      %v324 = vpow.pop %v323
      %vm325 = vcmask 57344
      %v326 = vsel %vm325, %v324, 0.0
      %327 = vadd.xlane.f32.xlu0 %v326
      %v328 = vpop.xlane.xlu0 %327
      %v329 = vsel %vm325, %v247, 0.0
      %330 = vadd.xlane.f32.xlu0 %v329
      %v331 = vpop.xlane.xlu0 %330
      %v332 = vmul.f32 %v331, 1.442695
      %v333 = vpow.pop %v332
      %v334 = vmul.f32 %v333, 8.0
      %v335 = vsub.f32 %v328, %v334
      %v336 = vadd.f32 %v335, 0.0
      %vm337 = vcmask 0
      %338 = vst.msk [vmem:[%s208] sm:$0x1] %vm337, %v336
      %p339 = scmp.lt.s32.totalorder %s16, 1
      %s340 = scalar_select %p339, %s16, 1
      %s341 = scalar_lea.vmem %s4, %s340
      // Predicated region
      $region37: #{ept_hinge_loss_smooth.1} parent=35 // pred_check
        %p342 = pneg %p128
      $region38: #{ept_hinge_loss_smooth.1} parent=35 // pred_check_branch
        %344 = sbr.rel (%p342) target = $region40
      $region39: #{ept_hinge_loss_smooth.1} parent=35 // pred_region
        _
      $region40: #{ept_hinge_loss_smooth.1} parent=35 // pred_fallthru
        _
    $region36: #{ept_hinge_loss_smooth.1} parent=5 // pred_fallthru
      _
    %p345 = scmp.le.s32.totalorder 2, %s11
    // Predicated region
    $region41: #{ept_hinge_loss_smooth.1} parent=5 // pred_check
      %p346 = pneg %p345
    $region42: #{ept_hinge_loss_smooth.1} parent=5 // pred_check_branch
      %348 = sbr.rel (%p346) target = $region44
    $region43: #{ept_hinge_loss_smooth.1} parent=5 // pred_region
      %s349 = ssub.s32 %s11, 2
      // Predicated region
      $region45: #{ept_hinge_loss_smooth.1} parent=43 // pred_check
        %p350 = pneg %p134
      $region46: #{ept_hinge_loss_smooth.1} parent=43 // pred_check_branch
        %352 = sbr.rel (%p350) target = $region48
      $region47: #{ept_hinge_loss_smooth.1} parent=43 // pred_region
        %p353 = scmp.lt.s32.totalorder %s17, 1
        %s354 = scalar_select %p353, %s17, 1
        %s355 = scalar_lea.vmem %s4, %s354
      $region48: #{ept_hinge_loss_smooth.1} parent=43 // pred_fallthru
        _
    $region44: #{ept_hinge_loss_smooth.1} parent=5 // pred_fallthru
      _
  $region6: #{ept_hinge_loss_smooth.1} parent=0 // loop_footer
    %s15 = sadd.s32 1, %s11
  $region7: #{ept_hinge_loss_smooth.1} parent=0 // loop_footer_branch
    %10 = sbr.rel target = $region3
  $region8: #{ept_hinge_loss_smooth.1} parent=0 // loop_exit
    _

</llo_original>
